<compile_context>
chip_gen: v5e
topology: v5e:2x2
jax: 0.10.0
libtpu: 0.0.40
codegen_flags: <defaults>
</compile_context>

<pallas_src>
import math

import jax
import jax.numpy as jnp
import numpy as np
from jax.experimental import pallas as pl
from jax.experimental.pallas import tpu as pltpu

# ---------------- static configuration (small shapes) ----------------
B = 2                      # batch
C, H, W = 3, 16, 16        # image NCHW
D_IMG = C * H * W          # 768 (multiple of 128 -> lane friendly)
DIM_X = 4                  # latent / action dimension
HID = 32                   # MLP hidden width
T = 8                      # sequence length
KL_BETA = 1.0
REGULARIZATION = True
LOG2PI = math.log(2.0 * math.pi)
OUT_W = 16                 # lane-packed output width (>= 2*DIM_X + 3)


# ---------------- Pallas kernel: whole sequence, single invocation -----------
def _cell_kernel(
    scal_ref,                                   # SMEM: [1/dt, dt, std, 1/(2 std^2), log std, ...]
    img_ref, ueps_ref, xinit_ref,               # (TB,768), (TB,3*Dx), (2B,Dx) time-ordered init
    wvel_ref, bvel_ref,                         # velocity (stacked [Wx; Wv; Wu])
    we1_ref, be1_ref, we2_ref, be2_ref,         # encoder MLP
    wd1_ref, bd1_ref, wd2_ref, bd2_ref,         # decoder MLP
    out_ref,                                    # (TB, OUT_W) packed output
):
    tb = img_ref.shape[0]
    dx = xinit_ref.shape[1]
    b = xinit_ref.shape[0] // 2

    inv_dt = scal_ref[0]
    dt = scal_ref[1]
    p_std = scal_ref[2]
    inv_2var = scal_ref[3]
    log_std = scal_ref[4]

    img = img_ref[...]                          # (TB, D_IMG)
    ueps = ueps_ref[...]                        # (TB, 3*Dx) = [u | eps_p | eps_q]
    u = ueps[:, 0:dx]
    eps_p = ueps[:, dx:2 * dx]
    eps_q = ueps[:, 2 * dx:3 * dx]

    # ---- Encoder q(x_t | I_t) for ALL timesteps at once (no time dependence).
    h_e = jax.nn.relu(
        jnp.dot(img, we1_ref[...], preferred_element_type=jnp.float32) + be1_ref[...])
    enc = jnp.dot(h_e, we2_ref[...], preferred_element_type=jnp.float32) + be2_ref[...]
    q_loc = enc[:, 0:dx]
    q_scale = jax.nn.softplus(enc[:, dx:2 * dx])
    x_q = q_loc + q_scale * eps_q               # x_q_t = q.rsample()   (TB, Dx)

    # ---- Shifted previous-state sequences (rows are t-major, stride b).
    # seq rows: [x_{-2}(b) ; x_{-1}(b) ; x_0 .. x_{T-1}]  -> (2b+TB, Dx)
    seq = jnp.concatenate([xinit_ref[...], x_q], axis=0)
    x_prev1 = seq[b:b + tb, :]                  # x_q_{t-1}
    x_prev2 = seq[0:tb, :]                      # x_q_{t-2}

    # ---- Velocity (fused ABC matmul, now M = T*B on the MXU).
    v_prev = (x_prev1 - x_prev2) * inv_dt
    xvu = jnp.concatenate([x_prev1, v_prev, u], axis=-1)               # (TB, 3*Dx)
    abc = jnp.dot(xvu, wvel_ref[...], preferred_element_type=jnp.float32) + bvel_ref[...]
    sp = jax.nn.softplus(abc[:, dx:3 * dx])                            # one EUP pass for B & C
    A = abc[:, 0:dx]
    v_t = v_prev + dt * (A * x_prev1 - sp[:, 0:dx] * v_prev + sp[:, dx:2 * dx] * u)

    # ---- Transition p(x_t | x_{t-1}, v_t) = N(x_{t-1} + dt*v_t, std); rsample.
    p_loc = x_prev1 + dt * v_t
    x_p = p_loc + p_std * eps_p

    # ---- Decoder log-likelihood p(I_t | x_p_t) = N(dec(x_p_t), 1).
    h_d = jax.nn.relu(
        jnp.dot(x_p, wd1_ref[...], preferred_element_type=jnp.float32) + bd1_ref[...])
    mu = jnp.dot(h_d, wd2_ref[...], preferred_element_type=jnp.float32) + bd2_ref[...]
    diff = img - mu
    sq_row = jnp.sum(diff * diff, axis=-1, keepdims=True)              # (TB, 1); LOG2PI folded out

    # ---- KL( q_encoder || p_transition ) and KL( q_encoder || N(0,1) ).
    log_q = jnp.log(q_scale)
    q_var = q_scale * q_scale
    kl = (log_std - log_q) + (q_var + (q_loc - p_loc) ** 2) * inv_2var - 0.5
    kl_row = jnp.sum(kl, axis=-1, keepdims=True)                       # (TB, 1)
    kl01 = -log_q + (q_var + q_loc * q_loc) * 0.5 - 0.5
    kl01_row = jnp.sum(kl01, axis=-1, keepdims=True)                   # (TB, 1)

    # ---- Single lane-packed output, written once.
    parts = [x_q, v_t, sq_row, kl_row, kl01_row]
    pad = out_ref.shape[1] - (2 * dx + 3)
    if pad > 0:
        parts.append(jnp.zeros((tb, pad), jnp.float32))
    out_ref[...] = jnp.concatenate(parts, axis=-1)


# ---------------- wrapper ----------------
_SMEM_SPEC = pl.BlockSpec(memory_space=pltpu.MemorySpace.SMEM)


def _full(shape):
    """Full-array block with a constant index_map -> resident in VMEM."""
    nd = len(shape)
    return pl.BlockSpec(shape, lambda i, _nd=nd: (0,) * _nd)


def newtonian_vae_v2_cell_seq(params, I_seq, x_q_tn1, x_q_tn2, u_seq, dt,
                              eps_p_seq, eps_q_seq):
    """Run the cell over a whole sequence in ONE pallas_call (fully batched).

    Returns per-step (E, E_ll, E_kl, x_q_t, v_t) with leading time axis,
    matching the PyTorch Pack fields of the cell applied step by step.
    """
    TT = I_seq.shape[0]
    TB = TT * B
    imgs = I_seq.reshape(TB, D_IMG).astype(jnp.float32)
    ueps = jnp.concatenate([u_seq, eps_p_seq, eps_q_seq], axis=-1).reshape(TB, 3 * DIM_X)
    # Time-ordered initial rows: [x_{t-2} ; x_{t-1}].
    x_init = jnp.concatenate([x_q_tn2, x_q_tn1], axis=0)               # (2B, DIM_X)

    p_std = float(params["trans_std"])
    scalars = jnp.asarray(
        [1.0 / dt, dt, p_std, 1.0 / (2.0 * p_std * p_std), math.log(p_std),
         0.0, 0.0, 0.0], jnp.float32)

    in_specs = [
        _SMEM_SPEC,                                                    # scalars
        _full(imgs.shape), _full(ueps.shape), _full(x_init.shape),
        _full(params["wvel"].shape), _full(params["bvel"].shape),
        _full(params["we1"].shape), _full(params["be1"].shape),
        _full(params["we2"].shape), _full(params["be2"].shape),
        _full(params["wd1"].shape), _full(params["bd1"].shape),
        _full(params["wd2"].shape), _full(params["bd2"].shape),
    ]

    out = pl.pallas_call(
        _cell_kernel,
        out_shape=jax.ShapeDtypeStruct((TB, OUT_W), jnp.float32),
        grid=(1,),
        in_specs=in_specs,
        out_specs=_full((TB, OUT_W)),
        compiler_params=pltpu.CompilerParams(
            dimension_semantics=("arbitrary",),
        ),
        # TODO(synk): for v7x megacore, add a leading "parallel" grid axis over
        # independent sequences; the time axis is now fully batched so it
        # would split cleanly across both TensorCores.
    )(scalars, imgs, ueps, x_init,
      params["wvel"], params["bvel"],
      params["we1"], params["be1"], params["we2"], params["be2"],
      params["wd1"], params["bd1"], params["wd2"], params["bd2"])

    x_q_t = out[:, 0:DIM_X].reshape(TT, B, DIM_X)
    v_t = out[:, DIM_X:2 * DIM_X].reshape(TT, B, DIM_X)
    sq_sum = out[:, 2 * DIM_X].reshape(TT, B)
    kl_sum = out[:, 2 * DIM_X + 1].reshape(TT, B)
    kl01_sum = out[:, 2 * DIM_X + 2].reshape(TT, B)

    # Trivial O(T) finalize (exact f32 batch-mean + compile-time constants).
    E_ll = -0.5 * jnp.mean(sq_sum, axis=1) - 0.5 * D_IMG * LOG2PI
    E_kl = jnp.mean(kl_sum, axis=1)
    E = E_ll - KL_BETA * E_kl
    if REGULARIZATION:
        E = E - jnp.mean(kl01_sum, axis=1)
    return E, E_ll, E_kl, x_q_t, v_t


def newtonian_vae_v2_cell(params, I_t, x_q_tn1, x_q_tn2, u_tn1, dt, eps_p, eps_q):
    """Single-step cell API (matches the PyTorch forward), via a T=1 sequence."""
    E, E_ll, E_kl, x_q_t, v_t = newtonian_vae_v2_cell_seq(
        params, I_t[None], x_q_tn1, x_q_tn2, u_tn1[None], dt,
        eps_p[None], eps_q[None])
    return E[0], E_ll[0], E_kl[0], x_q_t[0], v_t[0]


# ---------------- deterministic parameter init ----------------
def init_params(key):
    ks = jax.random.split(key, 8)

    def lin(k, fan_in, shape):
        return (jax.random.normal(k, shape, jnp.float32) / math.sqrt(fan_in)).astype(jnp.float32)

    return {
        # velocity: single stacked weight acting on concat([x, v, u])
        "wvel": lin(ks[0], 3 * DIM_X, (3 * DIM_X, 3 * DIM_X)),
        "bvel": jnp.zeros((1, 3 * DIM_X), jnp.float32),
        "we1": lin(ks[1], D_IMG, (D_IMG, HID)),
        "be1": jnp.zeros((1, HID), jnp.float32),
        "we2": lin(ks[2], HID, (HID, 2 * DIM_X)),
        "be2": jnp.zeros((1, 2 * DIM_X), jnp.float32),
        "wd1": lin(ks[3], DIM_X, (DIM_X, HID)),
        "bd1": jnp.zeros((1, HID), jnp.float32),
        "wd2": lin(ks[4], HID, (HID, D_IMG)),
        "bd2": jnp.zeros((1, D_IMG), jnp.float32),
        "trans_std": 0.1,
    }


# ---------------- pure-JAX reference (correctness check) ----------------
def reference(params, I_seq, x1_0, x2_0, u_seq, dt, eps_p_seq, eps_q_seq):
    p_std = jnp.float32(params["trans_std"])
    x1, x2 = x1_0, x2_0
    Es, Ells, Ekls, xqs, vts = [], [], [], [], []
    for t in range(I_seq.shape[0]):
        img = I_seq[t].reshape(B, -1)
        u, eps_p, eps_q = u_seq[t], eps_p_seq[t], eps_q_seq[t]
        v_tn1 = (x1 - x2) / dt
        abc = jnp.concatenate([x1, v_tn1, u], -1) @ params["wvel"] + params["bvel"]
        A, Braw, Craw = abc[:, :DIM_X], abc[:, DIM_X:2 * DIM_X], abc[:, 2 * DIM_X:]
        v_t = v_tn1 + dt * (A * x1 - jax.nn.softplus(Braw) * v_tn1
                            + jax.nn.softplus(Craw) * u)
        p_loc = x1 + dt * v_t
        x_p_t = p_loc + p_std * eps_p
        h_e = jax.nn.relu(img @ params["we1"] + params["be1"])
        enc = h_e @ params["we2"] + params["be2"]
        q_loc, q_scale = enc[:, :DIM_X], jax.nn.softplus(enc[:, DIM_X:])
        h_d = jax.nn.relu(x_p_t @ params["wd1"] + params["bd1"])
        mu_img = h_d @ params["wd2"] + params["bd2"]
        E_ll = jnp.mean(jnp.sum(-0.5 * ((img - mu_img) ** 2 + LOG2PI), axis=1))
        kl = (jnp.log(p_std / q_scale)
              + (q_scale ** 2 + (q_loc - p_loc) ** 2) / (2 * p_std ** 2) - 0.5)
        E_kl = jnp.mean(jnp.sum(kl, axis=1))
        E = E_ll - KL_BETA * E_kl
        if REGULARIZATION:
            kl01 = -jnp.log(q_scale) + (q_scale ** 2 + q_loc ** 2) / 2 - 0.5
            E = E - jnp.mean(jnp.sum(kl01, axis=1))
        x_q_t = q_loc + q_scale * eps_q
        Es.append(E); Ells.append(E_ll); Ekls.append(E_kl)
        xqs.append(x_q_t); vts.append(v_t)
        x2, x1 = x1, x_q_t
    return (jnp.stack(Es), jnp.stack(Ells), jnp.stack(Ekls),
            jnp.stack(xqs), jnp.stack(vts))


if __name__ == "__main__":
    key = jax.random.PRNGKey(0)
    k_img, k_x1, k_x2, k_u, k_ep, k_eq, k_par = jax.random.split(key, 7)

    I_seq = 0.5 * jax.random.normal(k_img, (T, B, C, H, W), jnp.float32)
    x_q_tn1 = jax.random.normal(k_x1, (B, DIM_X), jnp.float32)
    x_q_tn2 = jax.random.normal(k_x2, (B, DIM_X), jnp.float32)
    u_seq = jax.random.normal(k_u, (T, B, DIM_X), jnp.float32)
    eps_p_seq = jax.random.normal(k_ep, (T, B, DIM_X), jnp.float32)
    eps_q_seq = jax.random.normal(k_eq, (T, B, DIM_X), jnp.float32)
    dt = 0.1

    params = init_params(k_par)

    # Full-sequence fused kernel.
    out = newtonian_vae_v2_cell_seq(params, I_seq, x_q_tn1, x_q_tn2, u_seq, dt,
                                    eps_p_seq, eps_q_seq)
    out = jax.block_until_ready(out)
    ref = reference(params, I_seq, x_q_tn1, x_q_tn2, u_seq, dt,
                    eps_p_seq, eps_q_seq)
    for got, want in zip(out, ref):
        np.testing.assert_allclose(np.asarray(got), np.asarray(want),
                                   rtol=1e-3, atol=1e-3)

    # Single-step cell API (T=1) must match the first reference step.
    single = newtonian_vae_v2_cell(params, I_seq[0], x_q_tn1, x_q_tn2,
                                   u_seq[0], dt, eps_p_seq[0], eps_q_seq[0])
    single = jax.block_until_ready(single)
    for got, want in zip(single, [r[0] for r in ref]):
        np.testing.assert_allclose(np.asarray(got), np.asarray(want),
                                   rtol=1e-3, atol=1e-3)

    print("KERNEL_OK")
</pallas_src>

<mosaic_0001>
module attributes {stable_mosaic.version = 11 : i64} {
  func.func @_cell_kernel(%arg0: i32, %arg1: memref<8xf32, #tpu.memory_space<smem>>, %arg2: memref<16x768xf32, #tpu.memory_space<vmem>>, %arg3: memref<16x12xf32, #tpu.memory_space<vmem>>, %arg4: memref<4x4xf32, #tpu.memory_space<vmem>>, %arg5: memref<12x12xf32, #tpu.memory_space<vmem>>, %arg6: memref<1x12xf32, #tpu.memory_space<vmem>>, %arg7: memref<768x32xf32, #tpu.memory_space<vmem>>, %arg8: memref<1x32xf32, #tpu.memory_space<vmem>>, %arg9: memref<32x8xf32, #tpu.memory_space<vmem>>, %arg10: memref<1x8xf32, #tpu.memory_space<vmem>>, %arg11: memref<4x32xf32, #tpu.memory_space<vmem>>, %arg12: memref<1x32xf32, #tpu.memory_space<vmem>>, %arg13: memref<32x768xf32, #tpu.memory_space<vmem>>, %arg14: memref<1x768xf32, #tpu.memory_space<vmem>>, %arg15: memref<16x16xf32, #tpu.memory_space<vmem>>) attributes {dimension_semantics = [#tpu.dimension_semantics<arbitrary>], iteration_bounds = array<i64: 1>, scalar_prefetch = 0 : i64, scratch_operands = 0 : i64, tpu.core_type = #tpu.core_type<tc>, window_params = [{transform_indices = @transform_0, window_bounds = array<i64: 8>}, {pipeline_mode = #tpu.pipeline_mode<synchronous>, transform_indices = @transform_1, window_bounds = array<i64: 16, 768>}, {pipeline_mode = #tpu.pipeline_mode<synchronous>, transform_indices = @transform_2, window_bounds = array<i64: 16, 12>}, {pipeline_mode = #tpu.pipeline_mode<synchronous>, transform_indices = @transform_3, window_bounds = array<i64: 4, 4>}, {pipeline_mode = #tpu.pipeline_mode<synchronous>, transform_indices = @transform_4, window_bounds = array<i64: 12, 12>}, {pipeline_mode = #tpu.pipeline_mode<synchronous>, transform_indices = @transform_5, window_bounds = array<i64: 1, 12>}, {pipeline_mode = #tpu.pipeline_mode<synchronous>, transform_indices = @transform_6, window_bounds = array<i64: 768, 32>}, {pipeline_mode = #tpu.pipeline_mode<synchronous>, transform_indices = @transform_7, window_bounds = array<i64: 1, 32>}, {pipeline_mode = #tpu.pipeline_mode<synchronous>, transform_indices = @transform_8, window_bounds = array<i64: 32, 8>}, {pipeline_mode = #tpu.pipeline_mode<synchronous>, transform_indices = @transform_9, window_bounds = array<i64: 1, 8>}, {pipeline_mode = #tpu.pipeline_mode<synchronous>, transform_indices = @transform_10, window_bounds = array<i64: 4, 32>}, {pipeline_mode = #tpu.pipeline_mode<synchronous>, transform_indices = @transform_11, window_bounds = array<i64: 1, 32>}, {pipeline_mode = #tpu.pipeline_mode<synchronous>, transform_indices = @transform_12, window_bounds = array<i64: 32, 768>}, {pipeline_mode = #tpu.pipeline_mode<synchronous>, transform_indices = @transform_13, window_bounds = array<i64: 1, 768>}, {pipeline_mode = #tpu.pipeline_mode<synchronous>, transform_indices = @transform_14, window_bounds = array<i64: 16, 16>}]} {
    %c0 = arith.constant 0 : index
    %0 = memref.load %arg1[%c0] : memref<8xf32, #tpu.memory_space<smem>>
    %c1 = arith.constant 1 : index
    %1 = memref.load %arg1[%c1] : memref<8xf32, #tpu.memory_space<smem>>
    %c2 = arith.constant 2 : index
    %2 = memref.load %arg1[%c2] : memref<8xf32, #tpu.memory_space<smem>>
    %c3 = arith.constant 3 : index
    %3 = memref.load %arg1[%c3] : memref<8xf32, #tpu.memory_space<smem>>
    %c4 = arith.constant 4 : index
    %4 = memref.load %arg1[%c4] : memref<8xf32, #tpu.memory_space<smem>>
    %c0_0 = arith.constant 0 : index
    %c0_1 = arith.constant 0 : index
    %5 = vector.load %arg2[%c0_0, %c0_1] : memref<16x768xf32, #tpu.memory_space<vmem>>, vector<16x768xf32>
    %c0_2 = arith.constant 0 : index
    %c0_3 = arith.constant 0 : index
    %6 = vector.load %arg3[%c0_2, %c0_3] : memref<16x12xf32, #tpu.memory_space<vmem>>, vector<16x12xf32>
    %7 = vector.extract_strided_slice %6 {offsets = [0, 0], sizes = [16, 4], strides = [1, 1]} : vector<16x12xf32> to vector<16x4xf32>
    %8 = vector.extract_strided_slice %6 {offsets = [0, 4], sizes = [16, 4], strides = [1, 1]} : vector<16x12xf32> to vector<16x4xf32>
    %9 = vector.extract_strided_slice %6 {offsets = [0, 8], sizes = [16, 4], strides = [1, 1]} : vector<16x12xf32> to vector<16x4xf32>
    %c0_4 = arith.constant 0 : index
    %c0_5 = arith.constant 0 : index
    %10 = vector.load %arg7[%c0_4, %c0_5] : memref<768x32xf32, #tpu.memory_space<vmem>>, vector<768x32xf32>
    %cst = arith.constant dense<0.000000e+00> : vector<16x32xf32>
    %11 = tpu.matmul %5, %10, %cst {dimension_numbers = #tpu.dot_dimension_numbers<[1], [0], [0], [1], [0, 0, 1, 1], [], []>} : vector<16x768xf32>, vector<768x32xf32>, vector<16x32xf32> -> vector<16x32xf32>
    %c0_6 = arith.constant 0 : index
    %c0_7 = arith.constant 0 : index
    %12 = vector.load %arg8[%c0_6, %c0_7] : memref<1x32xf32, #tpu.memory_space<vmem>>, vector<1x32xf32>
    %13 = vector.broadcast %12 : vector<1x32xf32> to vector<16x32xf32>
    %14 = arith.addf %11, %13 : vector<16x32xf32>
    %cst_8 = arith.constant 0.000000e+00 : f32
    %15 = vector.broadcast %cst_8 : f32 to vector<16x32xf32>
    %16 = arith.maximumf %14, %15 : vector<16x32xf32>
    %c0_9 = arith.constant 0 : index
    %c0_10 = arith.constant 0 : index
    %17 = vector.load %arg9[%c0_9, %c0_10] : memref<32x8xf32, #tpu.memory_space<vmem>>, vector<32x8xf32>
    %cst_11 = arith.constant dense<0.000000e+00> : vector<16x8xf32>
    %18 = tpu.matmul %16, %17, %cst_11 {dimension_numbers = #tpu.dot_dimension_numbers<[1], [0], [0], [1], [0, 0, 1, 1], [], []>} : vector<16x32xf32>, vector<32x8xf32>, vector<16x8xf32> -> vector<16x8xf32>
    %c0_12 = arith.constant 0 : index
    %c0_13 = arith.constant 0 : index
    %19 = vector.load %arg10[%c0_12, %c0_13] : memref<1x8xf32, #tpu.memory_space<vmem>>, vector<1x8xf32>
    %20 = vector.broadcast %19 : vector<1x8xf32> to vector<16x8xf32>
    %21 = arith.addf %18, %20 : vector<16x8xf32>
    %22 = vector.extract_strided_slice %21 {offsets = [0, 0], sizes = [16, 4], strides = [1, 1]} : vector<16x8xf32> to vector<16x4xf32>
    %23 = vector.extract_strided_slice %21 {offsets = [0, 4], sizes = [16, 4], strides = [1, 1]} : vector<16x8xf32> to vector<16x4xf32>
    %cst_14 = arith.constant 0.000000e+00 : f32
    %24 = vector.broadcast %cst_14 : f32 to vector<16x4xf32>
    %25 = arith.maximumf %23, %24 : vector<16x4xf32>
    %26 = vector.broadcast %cst_14 : f32 to vector<16x4xf32>
    %27 = arith.subf %23, %26 : vector<16x4xf32>
    %28 = arith.cmpf one, %27, %27 : vector<16x4xf32>
    %29 = vector.broadcast %cst_14 : f32 to vector<16x4xf32>
    %30 = arith.addf %23, %29 : vector<16x4xf32>
    %31 = math.absf %27 : vector<16x4xf32>
    %cst_15 = arith.constant 0.000000e+00 : f32
    %32 = vector.broadcast %cst_15 : f32 to vector<16x4xf32>
    %33 = arith.subf %32, %31 : vector<16x4xf32>
    %34 = math.exp %33 : vector<16x4xf32>
    %35 = math.log1p %34 : vector<16x4xf32>
    %36 = arith.addf %25, %35 : vector<16x4xf32>
    %37 = arith.select %28, %30, %36 : vector<16x4xi1>, vector<16x4xf32>
    %38 = arith.mulf %37, %9 : vector<16x4xf32>
    %39 = arith.addf %22, %38 : vector<16x4xf32>
    %c0_16 = arith.constant 0 : index
    %c0_17 = arith.constant 0 : index
    %40 = vector.load %arg4[%c0_16, %c0_17] : memref<4x4xf32, #tpu.memory_space<vmem>>, vector<4x4xf32>
    %41 = tpu.concatenate %40, %39 in 0 : vector<4x4xf32>, vector<16x4xf32> -> vector<20x4xf32>
    %42 = vector.extract_strided_slice %41 {offsets = [2, 0], sizes = [16, 4], strides = [1, 1]} : vector<20x4xf32> to vector<16x4xf32>
    %43 = vector.extract_strided_slice %41 {offsets = [0, 0], sizes = [16, 4], strides = [1, 1]} : vector<20x4xf32> to vector<16x4xf32>
    %44 = arith.subf %42, %43 : vector<16x4xf32>
    %45 = vector.broadcast %0 : f32 to vector<16x4xf32>
    %46 = arith.mulf %44, %45 : vector<16x4xf32>
    %47 = tpu.concatenate %42, %46, %7 in 1 : vector<16x4xf32>, vector<16x4xf32>, vector<16x4xf32> -> vector<16x12xf32>
    %c0_18 = arith.constant 0 : index
    %c0_19 = arith.constant 0 : index
    %48 = vector.load %arg5[%c0_18, %c0_19] : memref<12x12xf32, #tpu.memory_space<vmem>>, vector<12x12xf32>
    %cst_20 = arith.constant dense<0.000000e+00> : vector<16x12xf32>
    %49 = tpu.matmul %47, %48, %cst_20 {dimension_numbers = #tpu.dot_dimension_numbers<[1], [0], [0], [1], [0, 0, 1, 1], [], []>} : vector<16x12xf32>, vector<12x12xf32>, vector<16x12xf32> -> vector<16x12xf32>
    %c0_21 = arith.constant 0 : index
    %c0_22 = arith.constant 0 : index
    %50 = vector.load %arg6[%c0_21, %c0_22] : memref<1x12xf32, #tpu.memory_space<vmem>>, vector<1x12xf32>
    %51 = vector.broadcast %50 : vector<1x12xf32> to vector<16x12xf32>
    %52 = arith.addf %49, %51 : vector<16x12xf32>
    %53 = vector.extract_strided_slice %52 {offsets = [0, 4], sizes = [16, 8], strides = [1, 1]} : vector<16x12xf32> to vector<16x8xf32>
    %cst_23 = arith.constant 0.000000e+00 : f32
    %54 = vector.broadcast %cst_23 : f32 to vector<16x8xf32>
    %55 = arith.maximumf %53, %54 : vector<16x8xf32>
    %56 = vector.broadcast %cst_23 : f32 to vector<16x8xf32>
    %57 = arith.subf %53, %56 : vector<16x8xf32>
    %58 = arith.cmpf one, %57, %57 : vector<16x8xf32>
    %59 = vector.broadcast %cst_23 : f32 to vector<16x8xf32>
    %60 = arith.addf %53, %59 : vector<16x8xf32>
    %61 = math.absf %57 : vector<16x8xf32>
    %cst_24 = arith.constant 0.000000e+00 : f32
    %62 = vector.broadcast %cst_24 : f32 to vector<16x8xf32>
    %63 = arith.subf %62, %61 : vector<16x8xf32>
    %64 = math.exp %63 : vector<16x8xf32>
    %65 = math.log1p %64 : vector<16x8xf32>
    %66 = arith.addf %55, %65 : vector<16x8xf32>
    %67 = arith.select %58, %60, %66 : vector<16x8xi1>, vector<16x8xf32>
    %68 = vector.extract_strided_slice %52 {offsets = [0, 0], sizes = [16, 4], strides = [1, 1]} : vector<16x12xf32> to vector<16x4xf32>
    %69 = arith.mulf %68, %42 : vector<16x4xf32>
    %70 = vector.extract_strided_slice %67 {offsets = [0, 0], sizes = [16, 4], strides = [1, 1]} : vector<16x8xf32> to vector<16x4xf32>
    %71 = arith.mulf %70, %46 : vector<16x4xf32>
    %72 = arith.subf %69, %71 : vector<16x4xf32>
    %73 = vector.extract_strided_slice %67 {offsets = [0, 4], sizes = [16, 4], strides = [1, 1]} : vector<16x8xf32> to vector<16x4xf32>
    %74 = arith.mulf %73, %7 : vector<16x4xf32>
    %75 = arith.addf %72, %74 : vector<16x4xf32>
    %76 = vector.broadcast %1 : f32 to vector<16x4xf32>
    %77 = arith.mulf %76, %75 : vector<16x4xf32>
    %78 = arith.addf %46, %77 : vector<16x4xf32>
    %79 = vector.broadcast %1 : f32 to vector<16x4xf32>
    %80 = arith.mulf %79, %78 : vector<16x4xf32>
    %81 = arith.addf %42, %80 : vector<16x4xf32>
    %82 = vector.broadcast %2 : f32 to vector<16x4xf32>
    %83 = arith.mulf %82, %8 : vector<16x4xf32>
    %84 = arith.addf %81, %83 : vector<16x4xf32>
    %c0_25 = arith.constant 0 : index
    %c0_26 = arith.constant 0 : index
    %85 = vector.load %arg11[%c0_25, %c0_26] : memref<4x32xf32, #tpu.memory_space<vmem>>, vector<4x32xf32>
    %cst_27 = arith.constant dense<0.000000e+00> : vector<16x32xf32>
    %86 = tpu.matmul %84, %85, %cst_27 {dimension_numbers = #tpu.dot_dimension_numbers<[1], [0], [0], [1], [0, 0, 1, 1], [], []>} : vector<16x4xf32>, vector<4x32xf32>, vector<16x32xf32> -> vector<16x32xf32>
    %c0_28 = arith.constant 0 : index
    %c0_29 = arith.constant 0 : index
    %87 = vector.load %arg12[%c0_28, %c0_29] : memref<1x32xf32, #tpu.memory_space<vmem>>, vector<1x32xf32>
    %88 = vector.broadcast %87 : vector<1x32xf32> to vector<16x32xf32>
    %89 = arith.addf %86, %88 : vector<16x32xf32>
    %cst_30 = arith.constant 0.000000e+00 : f32
    %90 = vector.broadcast %cst_30 : f32 to vector<16x32xf32>
    %91 = arith.maximumf %89, %90 : vector<16x32xf32>
    %c0_31 = arith.constant 0 : index
    %c0_32 = arith.constant 0 : index
    %92 = vector.load %arg13[%c0_31, %c0_32] : memref<32x768xf32, #tpu.memory_space<vmem>>, vector<32x768xf32>
    %cst_33 = arith.constant dense<0.000000e+00> : vector<16x768xf32>
    %93 = tpu.matmul %91, %92, %cst_33 {dimension_numbers = #tpu.dot_dimension_numbers<[1], [0], [0], [1], [0, 0, 1, 1], [], []>} : vector<16x32xf32>, vector<32x768xf32>, vector<16x768xf32> -> vector<16x768xf32>
    %c0_34 = arith.constant 0 : index
    %c0_35 = arith.constant 0 : index
    %94 = vector.load %arg14[%c0_34, %c0_35] : memref<1x768xf32, #tpu.memory_space<vmem>>, vector<1x768xf32>
    %95 = vector.broadcast %94 : vector<1x768xf32> to vector<16x768xf32>
    %96 = arith.addf %93, %95 : vector<16x768xf32>
    %97 = arith.subf %5, %96 : vector<16x768xf32>
    %98 = arith.mulf %97, %97 : vector<16x768xf32>
    %cst_36 = arith.constant dense<0.000000e+00> : vector<16xf32>
    %99 = vector.multi_reduction <add>, %98, %cst_36 [1] : vector<16x768xf32> to vector<16xf32>
    %100 = vector.shape_cast %99 : vector<16xf32> to vector<16x1xf32>
    %101 = math.log %37 : vector<16x4xf32>
    %102 = arith.mulf %37, %37 : vector<16x4xf32>
    %103 = vector.broadcast %4 : f32 to vector<16x4xf32>
    %104 = arith.subf %103, %101 : vector<16x4xf32>
    %105 = arith.subf %22, %81 : vector<16x4xf32>
    %106 = arith.mulf %105, %105 : vector<16x4xf32>
    %107 = arith.addf %102, %106 : vector<16x4xf32>
    %108 = vector.broadcast %3 : f32 to vector<16x4xf32>
    %109 = arith.mulf %107, %108 : vector<16x4xf32>
    %110 = arith.addf %104, %109 : vector<16x4xf32>
    %cst_37 = arith.constant 5.000000e-01 : f32
    %111 = vector.broadcast %cst_37 : f32 to vector<16x4xf32>
    %112 = arith.subf %110, %111 : vector<16x4xf32>
    %cst_38 = arith.constant dense<0.000000e+00> : vector<16xf32>
    %113 = vector.multi_reduction <add>, %112, %cst_38 [1] : vector<16x4xf32> to vector<16xf32>
    %114 = vector.shape_cast %113 : vector<16xf32> to vector<16x1xf32>
    %cst_39 = arith.constant 0.000000e+00 : f32
    %115 = vector.broadcast %cst_39 : f32 to vector<16x4xf32>
    %116 = arith.subf %115, %101 : vector<16x4xf32>
    %117 = arith.mulf %22, %22 : vector<16x4xf32>
    %118 = arith.addf %102, %117 : vector<16x4xf32>
    %cst_40 = arith.constant 5.000000e-01 : f32
    %119 = vector.broadcast %cst_40 : f32 to vector<16x4xf32>
    %120 = arith.mulf %118, %119 : vector<16x4xf32>
    %121 = arith.addf %116, %120 : vector<16x4xf32>
    %cst_41 = arith.constant 5.000000e-01 : f32
    %122 = vector.broadcast %cst_41 : f32 to vector<16x4xf32>
    %123 = arith.subf %121, %122 : vector<16x4xf32>
    %cst_42 = arith.constant dense<0.000000e+00> : vector<16xf32>
    %124 = vector.multi_reduction <add>, %123, %cst_42 [1] : vector<16x4xf32> to vector<16xf32>
    %125 = vector.shape_cast %124 : vector<16xf32> to vector<16x1xf32>
    %cst_43 = arith.constant 0.000000e+00 : f32
    %126 = vector.broadcast %cst_43 : f32 to vector<16x5xf32>
    %127 = tpu.concatenate %39, %78, %100, %114, %125, %126 in 1 : vector<16x4xf32>, vector<16x4xf32>, vector<16x1xf32>, vector<16x1xf32>, vector<16x1xf32>, vector<16x5xf32> -> vector<16x16xf32>
    %c0_44 = arith.constant 0 : index
    %c0_45 = arith.constant 0 : index
    %128 = vector.load %arg15[%c0_44, %c0_45] : memref<16x16xf32, #tpu.memory_space<vmem>>, vector<16x16xf32>
    tpu.vector_store %arg15[%c0_44, %c0_45], %127 {strides = array<i32>} : memref<16x16xf32, #tpu.memory_space<vmem>>, vector<16x16xf32>,
    return
  }
  func.func @transform_0(%arg0: i32) -> i32 {
    %c0_i32 = arith.constant 0 : i32
    %c0_i32_0 = arith.constant 0 : i32
    return %c0_i32 : i32
  }
  func.func @transform_1(%arg0: i32) -> (i32, i32) {
    %c0_i32 = arith.constant 0 : i32
    %c0_i32_0 = arith.constant 0 : i32
    %c0_i32_1 = arith.constant 0 : i32
    return %c0_i32, %c0_i32_0 : i32, i32
  }
  func.func @transform_2(%arg0: i32) -> (i32, i32) {
    %c0_i32 = arith.constant 0 : i32
    %c0_i32_0 = arith.constant 0 : i32
    %c0_i32_1 = arith.constant 0 : i32
    return %c0_i32, %c0_i32_0 : i32, i32
  }
  func.func @transform_3(%arg0: i32) -> (i32, i32) {
    %c0_i32 = arith.constant 0 : i32
    %c0_i32_0 = arith.constant 0 : i32
    %c0_i32_1 = arith.constant 0 : i32
    return %c0_i32, %c0_i32_0 : i32, i32
  }
  func.func @transform_4(%arg0: i32) -> (i32, i32) {
    %c0_i32 = arith.constant 0 : i32
    %c0_i32_0 = arith.constant 0 : i32
    %c0_i32_1 = arith.constant 0 : i32
    return %c0_i32, %c0_i32_0 : i32, i32
  }
  func.func @transform_5(%arg0: i32) -> (i32, i32) {
    %c0_i32 = arith.constant 0 : i32
    %c0_i32_0 = arith.constant 0 : i32
    %c0_i32_1 = arith.constant 0 : i32
    return %c0_i32, %c0_i32_0 : i32, i32
  }
  func.func @transform_6(%arg0: i32) -> (i32, i32) {
    %c0_i32 = arith.constant 0 : i32
    %c0_i32_0 = arith.constant 0 : i32
    %c0_i32_1 = arith.constant 0 : i32
    return %c0_i32, %c0_i32_0 : i32, i32
  }
  func.func @transform_7(%arg0: i32) -> (i32, i32) {
    %c0_i32 = arith.constant 0 : i32
    %c0_i32_0 = arith.constant 0 : i32
    %c0_i32_1 = arith.constant 0 : i32
    return %c0_i32, %c0_i32_0 : i32, i32
  }
  func.func @transform_8(%arg0: i32) -> (i32, i32) {
    %c0_i32 = arith.constant 0 : i32
    %c0_i32_0 = arith.constant 0 : i32
    %c0_i32_1 = arith.constant 0 : i32
    return %c0_i32, %c0_i32_0 : i32, i32
  }
  func.func @transform_9(%arg0: i32) -> (i32, i32) {
    %c0_i32 = arith.constant 0 : i32
    %c0_i32_0 = arith.constant 0 : i32
    %c0_i32_1 = arith.constant 0 : i32
    return %c0_i32, %c0_i32_0 : i32, i32
  }
  func.func @transform_10(%arg0: i32) -> (i32, i32) {
    %c0_i32 = arith.constant 0 : i32
    %c0_i32_0 = arith.constant 0 : i32
    %c0_i32_1 = arith.constant 0 : i32
    return %c0_i32, %c0_i32_0 : i32, i32
  }
  func.func @transform_11(%arg0: i32) -> (i32, i32) {
    %c0_i32 = arith.constant 0 : i32
    %c0_i32_0 = arith.constant 0 : i32
    %c0_i32_1 = arith.constant 0 : i32
    return %c0_i32, %c0_i32_0 : i32, i32
  }
  func.func @transform_12(%arg0: i32) -> (i32, i32) {
    %c0_i32 = arith.constant 0 : i32
    %c0_i32_0 = arith.constant 0 : i32
    %c0_i32_1 = arith.constant 0 : i32
    return %c0_i32, %c0_i32_0 : i32, i32
  }
  func.func @transform_13(%arg0: i32) -> (i32, i32) {
    %c0_i32 = arith.constant 0 : i32
    %c0_i32_0 = arith.constant 0 : i32
    %c0_i32_1 = arith.constant 0 : i32
    return %c0_i32, %c0_i32_0 : i32, i32
  }
  func.func @transform_14(%arg0: i32) -> (i32, i32) {
    %c0_i32 = arith.constant 0 : i32
    %c0_i32_0 = arith.constant 0 : i32
    %c0_i32_1 = arith.constant 0 : i32
    return %c0_i32, %c0_i32_0 : i32, i32
  }
}

</mosaic_0001>

<llo_original>
// kernel: tpu_custom_call.1
$region0: #{tpu_custom_call.1}
  #allocation0 [shape = 'u32[]', space=smem, size = 0x4, offset = 0x4, fixed_abs, tag = 'smem constant byte address 0x4 - core index']
  #allocation1 [shape = 'u32[72,128]{1,0:T(1,128)}', space=vmem, size = 0x9000, scoped, tag = 'internal scratch']
  %s0 = inlined_call_operand.vmem [shape: f32[8], index: 0, kind: input, shape index: {}]
  %s1 = inlined_call_operand.vmem [shape: f32[16,768], index: 1, kind: input, shape index: {}]
  %s2 = inlined_call_operand.vmem [shape: f32[16,12], index: 2, kind: input, shape index: {}]
  %s3 = inlined_call_operand.vmem [shape: f32[4,4], index: 3, kind: input, shape index: {}]
  %s4 = inlined_call_operand.vmem [shape: f32[12,12], index: 4, kind: input, shape index: {}]
  %s5 = inlined_call_operand.vmem [shape: f32[1,12], index: 5, kind: input, shape index: {}]
  %s6 = inlined_call_operand.vmem [shape: f32[768,32], index: 6, kind: input, shape index: {}]
  %s7 = inlined_call_operand.vmem [shape: f32[1,32], index: 7, kind: input, shape index: {}]
  %s8 = inlined_call_operand.vmem [shape: f32[32,8], index: 8, kind: input, shape index: {}]
  %s9 = inlined_call_operand.vmem [shape: f32[1,8], index: 9, kind: input, shape index: {}]
  %s10 = inlined_call_operand.vmem [shape: f32[4,32], index: 10, kind: input, shape index: {}]
  %s11 = inlined_call_operand.vmem [shape: f32[1,32], index: 11, kind: input, shape index: {}]
  %s12 = inlined_call_operand.vmem [shape: f32[32,768], index: 12, kind: input, shape index: {}]
  %s13 = inlined_call_operand.vmem [shape: f32[1,768], index: 13, kind: input, shape index: {}]
  %s14 = inlined_call_operand.hbm [shape: f32[16,16], index: 14, kind: output, shape index: {}]
  %s15 = sld [smem:[#allocation0]]
  $region70: #{tpu_custom_call.1} parent=0
    _
  %s17 = ssub.s32 1, %s15
  %s18 = scalar_select 0, %s17, %s15
  $region1: #{tpu_custom_call.1} parent=0
    #allocation2 [shape = 'u8[512]{0}', space=smem, size = 0x200, scoped, tag = 'input window, operand 0, single buffered']
    #allocation3 [shape = 's32[1]{0}', space=sflag, size = 0x4, scoped, tag = 'scoped memory for tpu_custom_call.1']
    #allocation4 [shape = 's32[1]{0}', space=sflag, size = 0x4, scoped, tag = 'scoped memory for tpu_custom_call.1']
    #allocation5 [shape = 'u8[8192]{0}', space=vmem, size = 0x2000, scoped, tag = 'output window, operand 0, single buffered']
    %19 = vsyncpa [#allocation4], 0
    %20 = vsyncpa [#allocation3], 0
    // Predicated region
    $region2: #{tpu_custom_call.1} parent=1 // pred_check
      _
    $region3: #{tpu_custom_call.1} parent=1 // pred_check_branch
      %22 = sbr.rel (0) target = $region5
    $region4: #{tpu_custom_call.1} parent=1 // pred_region
      %24 = vsyncadd [#allocation4], 0
      %s26 = sshll.u32 %s0, 4
      %s27 = int_to_ptr.vmem [resolvable:$true] %s26
      %29 = dma.vmem_to_smem %s27, 16, [#allocation2], [#allocation4]
    $region5: #{tpu_custom_call.1} parent=1 // pred_fallthru
      _
    // Predicated region
    $region6: #{tpu_custom_call.1} parent=1 // pred_check
      _
    $region7: #{tpu_custom_call.1} parent=1 // pred_check_branch
      %31 = sbr.rel (0) target = $region9
    $region8: #{tpu_custom_call.1} parent=1 // pred_region
      _
    $region9: #{tpu_custom_call.1} parent=1 // pred_fallthru
      _
    // Predicated region
    $region10: #{tpu_custom_call.1} parent=1 // pred_check
      _
    $region11: #{tpu_custom_call.1} parent=1 // pred_check_branch
      %33 = sbr.rel (0) target = $region13
    $region12: #{tpu_custom_call.1} parent=1 // pred_region
      _
    $region13: #{tpu_custom_call.1} parent=1 // pred_fallthru
      _
    // Predicated region
    $region14: #{tpu_custom_call.1} parent=1 // pred_check
      _
    $region15: #{tpu_custom_call.1} parent=1 // pred_check_branch
      %35 = sbr.rel (0) target = $region17
    $region16: #{tpu_custom_call.1} parent=1 // pred_region
      _
    $region17: #{tpu_custom_call.1} parent=1 // pred_fallthru
      _
    // Predicated region
    $region18: #{tpu_custom_call.1} parent=1 // pred_check
      _
    $region19: #{tpu_custom_call.1} parent=1 // pred_check_branch
      %37 = sbr.rel (0) target = $region21
    $region20: #{tpu_custom_call.1} parent=1 // pred_region
      _
    $region21: #{tpu_custom_call.1} parent=1 // pred_fallthru
      _
    // Predicated region
    $region22: #{tpu_custom_call.1} parent=1 // pred_check
      _
    $region23: #{tpu_custom_call.1} parent=1 // pred_check_branch
      %39 = sbr.rel (0) target = $region25
    $region24: #{tpu_custom_call.1} parent=1 // pred_region
      _
    $region25: #{tpu_custom_call.1} parent=1 // pred_fallthru
      _
    // Predicated region
    $region26: #{tpu_custom_call.1} parent=1 // pred_check
      _
    $region27: #{tpu_custom_call.1} parent=1 // pred_check_branch
      %41 = sbr.rel (0) target = $region29
    $region28: #{tpu_custom_call.1} parent=1 // pred_region
      _
    $region29: #{tpu_custom_call.1} parent=1 // pred_fallthru
      _
    // Predicated region
    $region30: #{tpu_custom_call.1} parent=1 // pred_check
      _
    $region31: #{tpu_custom_call.1} parent=1 // pred_check_branch
      %43 = sbr.rel (0) target = $region33
    $region32: #{tpu_custom_call.1} parent=1 // pred_region
      _
    $region33: #{tpu_custom_call.1} parent=1 // pred_fallthru
      _
    // Predicated region
    $region34: #{tpu_custom_call.1} parent=1 // pred_check
      _
    $region35: #{tpu_custom_call.1} parent=1 // pred_check_branch
      %45 = sbr.rel (0) target = $region37
    $region36: #{tpu_custom_call.1} parent=1 // pred_region
      _
    $region37: #{tpu_custom_call.1} parent=1 // pred_fallthru
      _
    // Predicated region
    $region38: #{tpu_custom_call.1} parent=1 // pred_check
      _
    $region39: #{tpu_custom_call.1} parent=1 // pred_check_branch
      %47 = sbr.rel (0) target = $region41
    $region40: #{tpu_custom_call.1} parent=1 // pred_region
      _
    $region41: #{tpu_custom_call.1} parent=1 // pred_fallthru
      _
    // Predicated region
    $region42: #{tpu_custom_call.1} parent=1 // pred_check
      _
    $region43: #{tpu_custom_call.1} parent=1 // pred_check_branch
      %49 = sbr.rel (0) target = $region45
    $region44: #{tpu_custom_call.1} parent=1 // pred_region
      _
    $region45: #{tpu_custom_call.1} parent=1 // pred_fallthru
      _
    // Predicated region
    $region46: #{tpu_custom_call.1} parent=1 // pred_check
      _
    $region47: #{tpu_custom_call.1} parent=1 // pred_check_branch
      %51 = sbr.rel (0) target = $region49
    $region48: #{tpu_custom_call.1} parent=1 // pred_region
      _
    $region49: #{tpu_custom_call.1} parent=1 // pred_fallthru
      _
    // Predicated region
    $region50: #{tpu_custom_call.1} parent=1 // pred_check
      _
    $region51: #{tpu_custom_call.1} parent=1 // pred_check_branch
      %53 = sbr.rel (0) target = $region53
    $region52: #{tpu_custom_call.1} parent=1 // pred_region
      _
    $region53: #{tpu_custom_call.1} parent=1 // pred_fallthru
      _
    // Predicated region
    $region54: #{tpu_custom_call.1} parent=1 // pred_check
      _
    $region55: #{tpu_custom_call.1} parent=1 // pred_check_branch
      %55 = sbr.rel (0) target = $region57
    $region56: #{tpu_custom_call.1} parent=1 // pred_region
      _
    $region57: #{tpu_custom_call.1} parent=1 // pred_fallthru
      _
    // Predicated region
    $region58: #{tpu_custom_call.1} parent=1 // pred_check
      _
    $region59: #{tpu_custom_call.1} parent=1 // pred_check_branch
      %57 = sbr.rel (0) target = $region61
    $region60: #{tpu_custom_call.1} parent=1 // pred_region
      %59 = dma.done [#allocation4], 16
    $region61: #{tpu_custom_call.1} parent=1 // pred_fallthru
      _
    %60 = sfence
    %s61 = sld [smem:[#allocation2]]
    %s62 = sld [smem:[#allocation2 + $0x1]]
    %s63 = sld [smem:[#allocation2 + $0x2]]
    %s64 = sld [smem:[#allocation2 + $0x3]]
    %s65 = sld [smem:[#allocation2 + $0x4]]
    %v66 = vld [vmem:[%s1] sm:$0xff]
    %v67 = vld [vmem:[%s1 + $0x8] sm:$0xff]
    %v68 = vld [vmem:[%s1 + $0x10] sm:$0xff]
    %v69 = vld [vmem:[%s1 + $0x18] sm:$0xff]
    %v70 = vld [vmem:[%s1 + $0x20] sm:$0xff]
    %v71 = vld [vmem:[%s1 + $0x28] sm:$0xff]
    %v72 = vld [vmem:[%s1 + $0x30] sm:$0xff]
    %v73 = vld [vmem:[%s1 + $0x38] sm:$0xff]
    %v74 = vld [vmem:[%s1 + $0x40] sm:$0xff]
    %v75 = vld [vmem:[%s1 + $0x48] sm:$0xff]
    %v76 = vld [vmem:[%s1 + $0x50] sm:$0xff]
    %v77 = vld [vmem:[%s1 + $0x58] sm:$0xff]
    %v78 = vld [vmem:[%s2] sm:$0xff]
    %v79 = vld [vmem:[%s2 + $0x8] sm:$0xff]
    %v80 = vld [vmem:[%s6] sm:$0xff]
    %v81 = vld [vmem:[%s6 + $0x8] sm:$0xff]
    %v82 = vld [vmem:[%s6 + $0x10] sm:$0xff]
    %v83 = vld [vmem:[%s6 + $0x18] sm:$0xff]
    %v84 = vld [vmem:[%s6 + $0x20] sm:$0xff]
    %v85 = vld [vmem:[%s6 + $0x28] sm:$0xff]
    %v86 = vld [vmem:[%s6 + $0x30] sm:$0xff]
    %v87 = vld [vmem:[%s6 + $0x38] sm:$0xff]
    %v88 = vld [vmem:[%s6 + $0x40] sm:$0xff]
    %v89 = vld [vmem:[%s6 + $0x48] sm:$0xff]
    %v90 = vld [vmem:[%s6 + $0x50] sm:$0xff]
    %v91 = vld [vmem:[%s6 + $0x58] sm:$0xff]
    %v92 = vld [vmem:[%s6 + $0x60] sm:$0xff]
    %v93 = vld [vmem:[%s6 + $0x68] sm:$0xff]
    %v94 = vld [vmem:[%s6 + $0x70] sm:$0xff]
    %v95 = vld [vmem:[%s6 + $0x78] sm:$0xff]
    %v96 = vld [vmem:[%s6 + $0x80] sm:$0xff]
    %v97 = vld [vmem:[%s6 + $0x88] sm:$0xff]
    %v98 = vld [vmem:[%s6 + $0x90] sm:$0xff]
    %v99 = vld [vmem:[%s6 + $0x98] sm:$0xff]
    %v100 = vld [vmem:[%s6 + $0xa0] sm:$0xff]
    %v101 = vld [vmem:[%s6 + $0xa8] sm:$0xff]
    %v102 = vld [vmem:[%s6 + $0xb0] sm:$0xff]
    %v103 = vld [vmem:[%s6 + $0xb8] sm:$0xff]
    %v104 = vld [vmem:[%s6 + $0xc0] sm:$0xff]
    %v105 = vld [vmem:[%s6 + $0xc8] sm:$0xff]
    %v106 = vld [vmem:[%s6 + $0xd0] sm:$0xff]
    %v107 = vld [vmem:[%s6 + $0xd8] sm:$0xff]
    %v108 = vld [vmem:[%s6 + $0xe0] sm:$0xff]
    %v109 = vld [vmem:[%s6 + $0xe8] sm:$0xff]
    %v110 = vld [vmem:[%s6 + $0xf0] sm:$0xff]
    %v111 = vld [vmem:[%s6 + $0xf8] sm:$0xff]
    %v112 = vld [vmem:[%s6 + $0x100] sm:$0xff]
    %v113 = vld [vmem:[%s6 + $0x108] sm:$0xff]
    %v114 = vld [vmem:[%s6 + $0x110] sm:$0xff]
    %v115 = vld [vmem:[%s6 + $0x118] sm:$0xff]
    %v116 = vld [vmem:[%s6 + $0x120] sm:$0xff]
    %v117 = vld [vmem:[%s6 + $0x128] sm:$0xff]
    %v118 = vld [vmem:[%s6 + $0x130] sm:$0xff]
    %v119 = vld [vmem:[%s6 + $0x138] sm:$0xff]
    %v120 = vld [vmem:[%s6 + $0x140] sm:$0xff]
    %v121 = vld [vmem:[%s6 + $0x148] sm:$0xff]
    %v122 = vld [vmem:[%s6 + $0x150] sm:$0xff]
    %v123 = vld [vmem:[%s6 + $0x158] sm:$0xff]
    %v124 = vld [vmem:[%s6 + $0x160] sm:$0xff]
    %v125 = vld [vmem:[%s6 + $0x168] sm:$0xff]
    %v126 = vld [vmem:[%s6 + $0x170] sm:$0xff]
    %v127 = vld [vmem:[%s6 + $0x178] sm:$0xff]
    %v128 = vld [vmem:[%s6 + $0x180] sm:$0xff]
    %v129 = vld [vmem:[%s6 + $0x188] sm:$0xff]
    %v130 = vld [vmem:[%s6 + $0x190] sm:$0xff]
    %v131 = vld [vmem:[%s6 + $0x198] sm:$0xff]
    %v132 = vld [vmem:[%s6 + $0x1a0] sm:$0xff]
    %v133 = vld [vmem:[%s6 + $0x1a8] sm:$0xff]
    %v134 = vld [vmem:[%s6 + $0x1b0] sm:$0xff]
    %v135 = vld [vmem:[%s6 + $0x1b8] sm:$0xff]
    %v136 = vld [vmem:[%s6 + $0x1c0] sm:$0xff]
    %v137 = vld [vmem:[%s6 + $0x1c8] sm:$0xff]
    %v138 = vld [vmem:[%s6 + $0x1d0] sm:$0xff]
    %v139 = vld [vmem:[%s6 + $0x1d8] sm:$0xff]
    %v140 = vld [vmem:[%s6 + $0x1e0] sm:$0xff]
    %v141 = vld [vmem:[%s6 + $0x1e8] sm:$0xff]
    %v142 = vld [vmem:[%s6 + $0x1f0] sm:$0xff]
    %v143 = vld [vmem:[%s6 + $0x1f8] sm:$0xff]
    %v144 = vld [vmem:[%s6 + $0x200] sm:$0xff]
    %v145 = vld [vmem:[%s6 + $0x208] sm:$0xff]
    %v146 = vld [vmem:[%s6 + $0x210] sm:$0xff]
    %v147 = vld [vmem:[%s6 + $0x218] sm:$0xff]
    %v148 = vld [vmem:[%s6 + $0x220] sm:$0xff]
    %v149 = vld [vmem:[%s6 + $0x228] sm:$0xff]
    %v150 = vld [vmem:[%s6 + $0x230] sm:$0xff]
    %v151 = vld [vmem:[%s6 + $0x238] sm:$0xff]
    %v152 = vld [vmem:[%s6 + $0x240] sm:$0xff]
    %v153 = vld [vmem:[%s6 + $0x248] sm:$0xff]
    %v154 = vld [vmem:[%s6 + $0x250] sm:$0xff]
    %v155 = vld [vmem:[%s6 + $0x258] sm:$0xff]
    %v156 = vld [vmem:[%s6 + $0x260] sm:$0xff]
    %v157 = vld [vmem:[%s6 + $0x268] sm:$0xff]
    %v158 = vld [vmem:[%s6 + $0x270] sm:$0xff]
    %v159 = vld [vmem:[%s6 + $0x278] sm:$0xff]
    %v160 = vld [vmem:[%s6 + $0x280] sm:$0xff]
    %v161 = vld [vmem:[%s6 + $0x288] sm:$0xff]
    %v162 = vld [vmem:[%s6 + $0x290] sm:$0xff]
    %v163 = vld [vmem:[%s6 + $0x298] sm:$0xff]
    %v164 = vld [vmem:[%s6 + $0x2a0] sm:$0xff]
    %v165 = vld [vmem:[%s6 + $0x2a8] sm:$0xff]
    %v166 = vld [vmem:[%s6 + $0x2b0] sm:$0xff]
    %v167 = vld [vmem:[%s6 + $0x2b8] sm:$0xff]
    %v168 = vld [vmem:[%s6 + $0x2c0] sm:$0xff]
    %v169 = vld [vmem:[%s6 + $0x2c8] sm:$0xff]
    %v170 = vld [vmem:[%s6 + $0x2d0] sm:$0xff]
    %v171 = vld [vmem:[%s6 + $0x2d8] sm:$0xff]
    %v172 = vld [vmem:[%s6 + $0x2e0] sm:$0xff]
    %v173 = vld [vmem:[%s6 + $0x2e8] sm:$0xff]
    %v174 = vld [vmem:[%s6 + $0x2f0] sm:$0xff]
    %v175 = vld [vmem:[%s6 + $0x2f8] sm:$0xff]
    %v176 = vld [vmem:[%s7] sm:$0x1]
    %v178 = vperm.slane %v176, 0
    %180 = vmatpush.msra.mxu0 %v95
    %181 = vmatpush.msra.mxu0 %v94
    %182 = vmatpush.msra.mxu0 %v93
    %183 = vmatpush.msra.mxu0 %v92
    %184 = vmatpush.msra.mxu0 %v91
    %185 = vmatpush.msra.mxu0 %v90
    %186 = vmatpush.msra.mxu0 %v89
    %187 = vmatpush.msra.mxu0 %v88
    %188 = vmatpush.msra.mxu0 %v87
    %189 = vmatpush.msra.mxu0 %v86
    %190 = vmatpush.msra.mxu0 %v85
    %191 = vmatpush.msra.mxu0 %v84
    %192 = vmatpush.msra.mxu0 %v83
    %193 = vmatpush.msra.mxu0 %v82
    %194 = vmatpush.msra.mxu0 %v81
    %195 = vmatpush.msra.mxu0 %v80
    %196 = vmatmul.f32.gmra.mxu0 %v66
    %v197 = vpop.f32.mrf.mxu0
    %v198 = vadd.f32 %v178, %v197
    %199 = vmatmul.f32.gmra.mxu0 %v72
    %v200 = vpop.f32.mrf.mxu0
    %v201 = vadd.f32 %v178, %v200
    %202 = vdwg.mxu0
    %203 = vmatpush.msra.mxu0 %v111
    %204 = vmatpush.msra.mxu0 %v110
    %205 = vmatpush.msra.mxu0 %v109
    %206 = vmatpush.msra.mxu0 %v108
    %207 = vmatpush.msra.mxu0 %v107
    %208 = vmatpush.msra.mxu0 %v106
    %209 = vmatpush.msra.mxu0 %v105
    %210 = vmatpush.msra.mxu0 %v104
    %211 = vmatpush.msra.mxu0 %v103
    %212 = vmatpush.msra.mxu0 %v102
    %213 = vmatpush.msra.mxu0 %v101
    %214 = vmatpush.msra.mxu0 %v100
    %215 = vmatpush.msra.mxu0 %v99
    %216 = vmatpush.msra.mxu0 %v98
    %217 = vmatpush.msra.mxu0 %v97
    %218 = vmatpush.msra.mxu0 %v96
    %219 = vmatmul.f32.gmra.mxu0 %v67
    %v220 = vpop.f32.mrf.mxu0
    %v221 = vadd.f32 %v198, %v220
    %222 = vmatmul.f32.gmra.mxu0 %v73
    %v223 = vpop.f32.mrf.mxu0
    %v224 = vadd.f32 %v201, %v223
    %225 = vdwg.mxu0
    %226 = vmatpush.msra.mxu0 %v127
    %227 = vmatpush.msra.mxu0 %v126
    %228 = vmatpush.msra.mxu0 %v125
    %229 = vmatpush.msra.mxu0 %v124
    %230 = vmatpush.msra.mxu0 %v123
    %231 = vmatpush.msra.mxu0 %v122
    %232 = vmatpush.msra.mxu0 %v121
    %233 = vmatpush.msra.mxu0 %v120
    %234 = vmatpush.msra.mxu0 %v119
    %235 = vmatpush.msra.mxu0 %v118
    %236 = vmatpush.msra.mxu0 %v117
    %237 = vmatpush.msra.mxu0 %v116
    %238 = vmatpush.msra.mxu0 %v115
    %239 = vmatpush.msra.mxu0 %v114
    %240 = vmatpush.msra.mxu0 %v113
    %241 = vmatpush.msra.mxu0 %v112
    %242 = vmatmul.f32.gmra.mxu0 %v68
    %v243 = vpop.f32.mrf.mxu0
    %v244 = vadd.f32 %v221, %v243
    %245 = vmatmul.f32.gmra.mxu0 %v74
    %v246 = vpop.f32.mrf.mxu0
    %v247 = vadd.f32 %v224, %v246
    %248 = vdwg.mxu0
    %249 = vmatpush.msra.mxu0 %v143
    %250 = vmatpush.msra.mxu0 %v142
    %251 = vmatpush.msra.mxu0 %v141
    %252 = vmatpush.msra.mxu0 %v140
    %253 = vmatpush.msra.mxu0 %v139
    %254 = vmatpush.msra.mxu0 %v138
    %255 = vmatpush.msra.mxu0 %v137
    %256 = vmatpush.msra.mxu0 %v136
    %257 = vmatpush.msra.mxu0 %v135
    %258 = vmatpush.msra.mxu0 %v134
    %259 = vmatpush.msra.mxu0 %v133
    %260 = vmatpush.msra.mxu0 %v132
    %261 = vmatpush.msra.mxu0 %v131
    %262 = vmatpush.msra.mxu0 %v130
    %263 = vmatpush.msra.mxu0 %v129
    %264 = vmatpush.msra.mxu0 %v128
    %265 = vmatmul.f32.gmra.mxu0 %v69
    %v266 = vpop.f32.mrf.mxu0
    %v267 = vadd.f32 %v244, %v266
    %268 = vmatmul.f32.gmra.mxu0 %v75
    %v269 = vpop.f32.mrf.mxu0
    %v270 = vadd.f32 %v247, %v269
    %271 = vdwg.mxu0
    %272 = vmatpush.msra.mxu0 %v159
    %273 = vmatpush.msra.mxu0 %v158
    %274 = vmatpush.msra.mxu0 %v157
    %275 = vmatpush.msra.mxu0 %v156
    %276 = vmatpush.msra.mxu0 %v155
    %277 = vmatpush.msra.mxu0 %v154
    %278 = vmatpush.msra.mxu0 %v153
    %279 = vmatpush.msra.mxu0 %v152
    %280 = vmatpush.msra.mxu0 %v151
    %281 = vmatpush.msra.mxu0 %v150
    %282 = vmatpush.msra.mxu0 %v149
    %283 = vmatpush.msra.mxu0 %v148
    %284 = vmatpush.msra.mxu0 %v147
    %285 = vmatpush.msra.mxu0 %v146
    %286 = vmatpush.msra.mxu0 %v145
    %287 = vmatpush.msra.mxu0 %v144
    %288 = vmatmul.f32.gmra.mxu0 %v70
    %v289 = vpop.f32.mrf.mxu0
    %v290 = vadd.f32 %v267, %v289
    %291 = vmatmul.f32.gmra.mxu0 %v76
    %v292 = vpop.f32.mrf.mxu0
    %v293 = vadd.f32 %v270, %v292
    %294 = vdwg.mxu0
    %295 = vmatpush.msra.mxu0 %v175
    %296 = vmatpush.msra.mxu0 %v174
    %297 = vmatpush.msra.mxu0 %v173
    %298 = vmatpush.msra.mxu0 %v172
    %299 = vmatpush.msra.mxu0 %v171
    %300 = vmatpush.msra.mxu0 %v170
    %301 = vmatpush.msra.mxu0 %v169
    %302 = vmatpush.msra.mxu0 %v168
    %303 = vmatpush.msra.mxu0 %v167
    %304 = vmatpush.msra.mxu0 %v166
    %305 = vmatpush.msra.mxu0 %v165
    %306 = vmatpush.msra.mxu0 %v164
    %307 = vmatpush.msra.mxu0 %v163
    %308 = vmatpush.msra.mxu0 %v162
    %309 = vmatpush.msra.mxu0 %v161
    %310 = vmatpush.msra.mxu0 %v160
    %311 = vmatmul.f32.gmra.mxu0 %v71
    %v312 = vpop.f32.mrf.mxu0
    %v313 = vadd.f32 %v290, %v312
    %314 = vmatmul.f32.gmra.mxu0 %v77
    %v315 = vpop.f32.mrf.mxu0
    %v316 = vadd.f32 %v293, %v315
    %317 = vdwg.mxu0
    %v318 = vmax.f32 %v313, 0.0
    %v319 = vmax.f32 %v316, 0.0
    %v320 = vld [vmem:[%s8] sm:$0xff]
    %v321 = vld [vmem:[%s8 + $0x8] sm:$0xff]
    %v322 = vld [vmem:[%s8 + $0x10] sm:$0xff]
    %v323 = vld [vmem:[%s8 + $0x18] sm:$0xff]
    %v324 = vld [vmem:[%s9] sm:$0x1]
    %v326 = vperm.slane %v324, 0
    %vm328 = vcmask 261120
    %v330 = vsel %vm328, %v318, 0
    %v333 = vsel %vm328, %v319, 0
    %335 = vmatpush.msra.mxu0 0.0
    %336 = vmatpush.msra.mxu0 0.0
    %337 = vmatpush.msra.mxu0 0.0
    %338 = vmatpush.msra.mxu0 0.0
    %339 = vmatpush.msra.mxu0 0.0
    %340 = vmatpush.msra.mxu0 0.0
    %341 = vmatpush.msra.mxu0 0.0
    %342 = vmatpush.msra.mxu0 0.0
    %343 = vmatpush.msra.mxu0 0.0
    %344 = vmatpush.msra.mxu0 0.0
    %345 = vmatpush.msra.mxu0 0.0
    %346 = vmatpush.msra.mxu0 0.0
    %347 = vmatpush.msra.mxu0 %v323
    %348 = vmatpush.msra.mxu0 %v322
    %349 = vmatpush.msra.mxu0 %v321
    %350 = vmatpush.msra.mxu0 %v320
    %351 = vmatmul.f32.gmra.mxu0 %v330
    %v352 = vpop.f32.mrf.mxu0
    %v353 = vadd.f32 %v326, %v352
    %354 = vmatmul.f32.gmra.mxu0 %v333
    %v355 = vpop.f32.mrf.mxu0
    %v356 = vadd.f32 %v326, %v355
    %357 = vdwg.mxu0
    %v358 = vmax.f32 %v353, 0.0
    %v359 = vmax.f32 %v356, 0.0
    %vm360 = vcmp.ne.f32.partialorder %v353, %v353
    %vm361 = vcmp.ne.f32.partialorder %v356, %v356
    %v362 = vadd.f32 %v353, 0.0
    %v363 = vadd.f32 %v356, 0.0
    %v364 = vand.u32 2147483647, %v353
    %v365 = vand.u32 2147483647, %v356
    %v366 = vsub.f32 0.0, %v364
    %v367 = vsub.f32 0.0, %v365
    %v368 = vmul.f32 %v366, 1.442695
    %v369 = vpow.pop %v368
    %v370 = vmul.f32 %v367, 1.442695
    %v371 = vpow.pop %v370
    %v372 = vadd.f32 %v369, 1.0
    %v373 = vlog2.pop %v372
    %v374 = vmul.f32 %v373, 0.6931472
    %v375 = vmul.f32 -0.5, %v369
    %v376 = vadd.f32 %v375, 1.0
    %v377 = vmul.f32 %v376, %v369
    %v378 = vand.u32 2147483647, %v369
    %vm379 = vcmp.lt.f32.partialorder %v378, 0.0004427343
    %v380 = vsel %vm379, %v377, %v374
    %v381 = vadd.f32 %v371, 1.0
    %v382 = vlog2.pop %v381
    %v383 = vmul.f32 %v382, 0.6931472
    %v384 = vmul.f32 -0.5, %v371
    %v385 = vadd.f32 %v384, 1.0
    %v386 = vmul.f32 %v385, %v371
    %v387 = vand.u32 2147483647, %v371
    %vm388 = vcmp.lt.f32.partialorder %v387, 0.0004427343
    %v389 = vsel %vm388, %v386, %v383
    %v390 = vadd.f32 %v358, %v380
    %v391 = vadd.f32 %v359, %v389
    %v392 = vsel %vm360, %v362, %v390
    %v393 = vsel %vm361, %v363, %v391
    %396 = vrot.lane.b32.xlu0 %v78, 124
    %v397 = vpop.permute.xlu0 %396
    %398 = vrot.lane.b32.xlu0 %v79, 124
    %v399 = vpop.permute.xlu0 %398
    %v402 = vmul.f32 %v392, %v397
    %v403 = vmul.f32 %v393, %v399
    %406 = vrot.lane.b32.xlu0 %v402, 124
    %v407 = vpop.permute.xlu0 %406
    %408 = vrot.lane.b32.xlu0 %v403, 124
    %v409 = vpop.permute.xlu0 %408
    %v412 = vadd.f32 %v353, %v407
    %v413 = vadd.f32 %v356, %v409
    %v414 = vld [vmem:[%s3] sm:$0xf]
    %vm417 = vcmask 1043456
    %v418 = vrot.slane %v412, 4
    %v419 = vrot.slane %v413, 4
    %v420 = vsel %vm417, %v418, %v419
    %v424 = vsel %vm417, %v414, %v418
    %vm426 = vcmask 1041408
    %v427 = vrot.slane %v424, 6
    %v428 = vrot.slane %v420, 6
    %v429 = vsel %vm426, %v427, %v428
    %v433 = vsub.f32 %v424, %v427
    %v434 = vsub.f32 %v420, %v429
    %v435 = vsub.f32 %v419, %v428
    %v436 = vstv %s61
    %v437 = vmul.f32 %v433, %v436
    %v438 = vmul.f32 %v434, %v436
    %v439 = vmul.f32 %v435, %v436
    %443 = vrot.lane.b32.xlu0 %v437, 4
    %v444 = vpop.permute.xlu0 %443
    %445 = vrot.lane.b32.xlu0 %v438, 4
    %v446 = vpop.permute.xlu0 %445
    %447 = vrot.lane.b32.xlu0 %v439, 4
    %v448 = vpop.permute.xlu0 %447
    %v452 = vrot.slane %v78, 6
    %v453 = vrot.slane %v79, 6
    %v454 = vsel %vm426, %v452, %v453
    %455 = vrot.lane.b32.xlu0 %v452, 8
    %v456 = vpop.permute.xlu0 %455
    %457 = vrot.lane.b32.xlu0 %v454, 8
    %v458 = vpop.permute.xlu0 %457
    %459 = vrot.lane.b32.xlu0 %v453, 8
    %v460 = vpop.permute.xlu0 %459
    %vm464 = vcmask 31744
    %v465 = vsel %vm464, %v424, %v444
    %v466 = vsel %vm464, %v420, %v446
    %v467 = vsel %vm464, %v419, %v448
    %vm468 = vcmask 64512
    %v469 = vsel %vm468, %v465, %v456
    %v470 = vsel %vm468, %v466, %v458
    %v471 = vsel %vm468, %v467, %v460
    %v472 = vld [vmem:[%s4] sm:$0xff]
    %v473 = vld [vmem:[%s4 + $0x8] sm:$0xf]
    %v474 = vld [vmem:[%s5] sm:$0x1]
    %v476 = vperm.slane %v474, 0
    %vm481 = vcmask 1045504
    %v482 = vrot.slane %v469, 2
    %v483 = vrot.slane %v470, 2
    %v484 = vsel %vm481, %v482, %v483
    %v485 = vrot.slane %v471, 2
    %v486 = vsel %vm481, %v483, %v485
    %vm487 = vcmask 97280
    %v488 = vsel %vm487, %v484, 0
    %v490 = vsel %vm487, %v486, 0
    %v493 = vsel %vm417, %v473, 0
    %495 = vmatpush.msra.mxu0 0.0
    %496 = vmatpush.msra.mxu0 0.0
    %497 = vmatpush.msra.mxu0 0.0
    %498 = vmatpush.msra.mxu0 0.0
    %499 = vmatpush.msra.mxu0 0.0
    %500 = vmatpush.msra.mxu0 0.0
    %501 = vmatpush.msra.mxu0 0.0
    %502 = vmatpush.msra.mxu0 0.0
    %503 = vmatpush.msra.mxu0 0.0
    %504 = vmatpush.msra.mxu0 0.0
    %505 = vmatpush.msra.mxu0 0.0
    %506 = vmatpush.msra.mxu0 0.0
    %507 = vmatpush.msra.mxu0 0.0
    %508 = vmatpush.msra.mxu0 0.0
    %509 = vmatpush.msra.mxu0 %v493
    %510 = vmatpush.msra.mxu0 %v472
    %511 = vmatmul.f32.gmra.mxu0 %v488
    %v512 = vpop.f32.mrf.mxu0
    %v513 = vadd.f32 %v476, %v512
    %514 = vmatmul.f32.gmra.mxu0 %v490
    %v515 = vpop.f32.mrf.mxu0
    %v516 = vadd.f32 %v476, %v515
    %517 = vdwg.mxu0
    %v518 = vmax.f32 %v513, 0.0
    %v519 = vmax.f32 %v516, 0.0
    %vm520 = vcmp.ne.f32.partialorder %v513, %v513
    %vm521 = vcmp.ne.f32.partialorder %v516, %v516
    %v522 = vadd.f32 %v513, 0.0
    %v523 = vadd.f32 %v516, 0.0
    %v524 = vand.u32 2147483647, %v513
    %v525 = vand.u32 2147483647, %v516
    %v526 = vsub.f32 0.0, %v524
    %v527 = vsub.f32 0.0, %v525
    %v528 = vmul.f32 %v526, 1.442695
    %v529 = vpow.pop %v528
    %v530 = vmul.f32 %v527, 1.442695
    %v531 = vpow.pop %v530
    %v532 = vadd.f32 %v529, 1.0
    %v533 = vlog2.pop %v532
    %v534 = vmul.f32 %v533, 0.6931472
    %v535 = vmul.f32 -0.5, %v529
    %v536 = vadd.f32 %v535, 1.0
    %v537 = vmul.f32 %v536, %v529
    %v538 = vand.u32 2147483647, %v529
    %vm539 = vcmp.lt.f32.partialorder %v538, 0.0004427343
    %v540 = vsel %vm539, %v537, %v534
    %v541 = vadd.f32 %v531, 1.0
    %v542 = vlog2.pop %v541
    %v543 = vmul.f32 %v542, 0.6931472
    %v544 = vmul.f32 -0.5, %v531
    %v545 = vadd.f32 %v544, 1.0
    %v546 = vmul.f32 %v545, %v531
    %v547 = vand.u32 2147483647, %v531
    %vm548 = vcmp.lt.f32.partialorder %v547, 0.0004427343
    %v549 = vsel %vm548, %v546, %v543
    %v550 = vadd.f32 %v518, %v540
    %v551 = vadd.f32 %v519, %v549
    %v552 = vsel %vm520, %v522, %v550
    %v553 = vsel %vm521, %v523, %v551
    %v554 = vrot.slane %v424, 2
    %v555 = vrot.slane %v420, 2
    %v556 = vsel %vm481, %v554, %v555
    %v557 = vrot.slane %v419, 2
    %v558 = vsel %vm481, %v555, %v557
    %v561 = vmul.f32 %v513, %v556
    %v562 = vmul.f32 %v516, %v558
    %v563 = vrot.slane %v437, 2
    %v564 = vrot.slane %v438, 2
    %v565 = vsel %vm481, %v563, %v564
    %v566 = vrot.slane %v439, 2
    %v567 = vsel %vm481, %v564, %v566
    %568 = vrot.lane.b32.xlu0 %v565, 4
    %v569 = vpop.permute.xlu0 %568
    %570 = vrot.lane.b32.xlu0 %v567, 4
    %v571 = vpop.permute.xlu0 %570
    %v574 = vmul.f32 %v552, %v569
    %v575 = vmul.f32 %v553, %v571
    %578 = vrot.lane.b32.xlu0 %v574, 124
    %v579 = vpop.permute.xlu0 %578
    %580 = vrot.lane.b32.xlu0 %v575, 124
    %v581 = vpop.permute.xlu0 %580
    %v584 = vsub.f32 %v561, %v579
    %v585 = vsub.f32 %v562, %v581
    %586 = vrot.lane.b32.xlu0 %v78, 8
    %v587 = vpop.permute.xlu0 %586
    %588 = vrot.lane.b32.xlu0 %v79, 8
    %v589 = vpop.permute.xlu0 %588
    %v592 = vmul.f32 %v552, %v587
    %v593 = vmul.f32 %v553, %v589
    %596 = vrot.lane.b32.xlu0 %v592, 120
    %v597 = vpop.permute.xlu0 %596
    %598 = vrot.lane.b32.xlu0 %v593, 120
    %v599 = vpop.permute.xlu0 %598
    %v602 = vadd.f32 %v584, %v597
    %v603 = vadd.f32 %v585, %v599
    %v604 = vstv %s62
    %v605 = vmul.f32 %v604, %v602
    %v606 = vmul.f32 %v604, %v603
    %v609 = vrot.slane %v605, 6
    %v610 = vrot.slane %v606, 6
    %v611 = vsel %vm426, %v609, %v610
    %v615 = vadd.f32 %v437, %v609
    %v616 = vadd.f32 %v438, %v611
    %v617 = vadd.f32 %v439, %v610
    %v618 = vmul.f32 %v604, %v615
    %v619 = vmul.f32 %v604, %v616
    %v620 = vmul.f32 %v604, %v617
    %v621 = vadd.f32 %v424, %v618
    %v622 = vadd.f32 %v420, %v619
    %v623 = vadd.f32 %v419, %v620
    %v624 = vstv %s63
    %v625 = vmul.f32 %v624, %v78
    %v626 = vmul.f32 %v624, %v79
    %v629 = vrot.slane %v625, 6
    %v630 = vrot.slane %v626, 6
    %v631 = vsel %vm426, %v629, %v630
    %632 = vrot.lane.b32.xlu0 %v629, 124
    %v633 = vpop.permute.xlu0 %632
    %634 = vrot.lane.b32.xlu0 %v631, 124
    %v635 = vpop.permute.xlu0 %634
    %636 = vrot.lane.b32.xlu0 %v630, 124
    %v637 = vpop.permute.xlu0 %636
    %v641 = vadd.f32 %v621, %v633
    %v642 = vadd.f32 %v622, %v635
    %v643 = vadd.f32 %v623, %v637
    %v644 = vld [vmem:[%s10] sm:$0xf]
    %v645 = vld [vmem:[%s11] sm:$0x1]
    %v647 = vperm.slane %v645, 0
    %v652 = vrot.slane %v641, 2
    %v653 = vrot.slane %v642, 2
    %v654 = vsel %vm481, %v652, %v653
    %v655 = vrot.slane %v643, 2
    %v656 = vsel %vm481, %v653, %v655
    %v657 = vsel %vm464, %v654, 0
    %v659 = vsel %vm464, %v656, 0
    %v662 = vsel %vm417, %v644, 0
    %664 = vmatpush.msra.mxu0 0.0
    %665 = vmatpush.msra.mxu0 0.0
    %666 = vmatpush.msra.mxu0 0.0
    %667 = vmatpush.msra.mxu0 0.0
    %668 = vmatpush.msra.mxu0 0.0
    %669 = vmatpush.msra.mxu0 0.0
    %670 = vmatpush.msra.mxu0 0.0
    %671 = vmatpush.msra.mxu0 0.0
    %672 = vmatpush.msra.mxu0 0.0
    %673 = vmatpush.msra.mxu0 0.0
    %674 = vmatpush.msra.mxu0 0.0
    %675 = vmatpush.msra.mxu0 0.0
    %676 = vmatpush.msra.mxu0 0.0
    %677 = vmatpush.msra.mxu0 0.0
    %678 = vmatpush.msra.mxu0 0.0
    %679 = vmatpush.msra.mxu0 %v662
    %680 = vmatmul.f32.gmra.mxu0 %v657
    %v681 = vpop.f32.mrf.mxu0
    %v682 = vadd.f32 %v647, %v681
    %683 = vmatmul.f32.gmra.mxu0 %v659
    %v684 = vpop.f32.mrf.mxu0
    %v685 = vadd.f32 %v647, %v684
    %686 = vdwg.mxu0
    %v687 = vmax.f32 %v682, 0.0
    %v688 = vmax.f32 %v685, 0.0
    %v689 = vld [vmem:[%s12] sm:$0xff]
    %v690 = vld [vmem:[%s12 + $0x8] sm:$0xff]
    %v691 = vld [vmem:[%s12 + $0x10] sm:$0xff]
    %v692 = vld [vmem:[%s12 + $0x18] sm:$0xff]
    %v693 = vld [vmem:[%s12 + $0x20] sm:$0xff]
    %v694 = vld [vmem:[%s12 + $0x28] sm:$0xff]
    %v695 = vld [vmem:[%s12 + $0x30] sm:$0xff]
    %v696 = vld [vmem:[%s12 + $0x38] sm:$0xff]
    %v697 = vld [vmem:[%s12 + $0x40] sm:$0xff]
    %v698 = vld [vmem:[%s12 + $0x48] sm:$0xff]
    %v699 = vld [vmem:[%s12 + $0x50] sm:$0xff]
    %v700 = vld [vmem:[%s12 + $0x58] sm:$0xff]
    %v701 = vld [vmem:[%s12 + $0x60] sm:$0xff]
    %v702 = vld [vmem:[%s12 + $0x68] sm:$0xff]
    %v703 = vld [vmem:[%s12 + $0x70] sm:$0xff]
    %v704 = vld [vmem:[%s12 + $0x78] sm:$0xff]
    %v705 = vld [vmem:[%s12 + $0x80] sm:$0xff]
    %v706 = vld [vmem:[%s12 + $0x88] sm:$0xff]
    %v707 = vld [vmem:[%s12 + $0x90] sm:$0xff]
    %v708 = vld [vmem:[%s12 + $0x98] sm:$0xff]
    %v709 = vld [vmem:[%s12 + $0xa0] sm:$0xff]
    %v710 = vld [vmem:[%s12 + $0xa8] sm:$0xff]
    %v711 = vld [vmem:[%s12 + $0xb0] sm:$0xff]
    %v712 = vld [vmem:[%s12 + $0xb8] sm:$0xff]
    %v713 = vld [vmem:[%s13] sm:$0x3f]
    %v715 = vperm.slane %v713, 0
    %v716 = vperm.slane %v713, 1
    %v717 = vperm.slane %v713, 2
    %v718 = vperm.slane %v713, 3
    %v719 = vperm.slane %v713, 4
    %v720 = vperm.slane %v713, 5
    %v728 = vsel %vm328, %v687, 0
    %v731 = vsel %vm328, %v688, 0
    %733 = vmatpush.msra.mxu0 0.0
    %734 = vmatpush.msra.mxu0 0.0
    %735 = vmatpush.msra.mxu0 0.0
    %736 = vmatpush.msra.mxu0 0.0
    %737 = vmatpush.msra.mxu0 0.0
    %738 = vmatpush.msra.mxu0 0.0
    %739 = vmatpush.msra.mxu0 0.0
    %740 = vmatpush.msra.mxu0 0.0
    %741 = vmatpush.msra.mxu0 0.0
    %742 = vmatpush.msra.mxu0 0.0
    %743 = vmatpush.msra.mxu0 0.0
    %744 = vmatpush.msra.mxu0 0.0
    %745 = vmatpush.msra.mxu0 %v707
    %746 = vmatpush.msra.mxu0 %v701
    %747 = vmatpush.msra.mxu0 %v695
    %748 = vmatpush.msra.mxu0 %v689
    %749 = vmatmul.f32.gmra.mxu0 %v728
    %v750 = vpop.f32.mrf.mxu0
    %v751 = vadd.f32 %v715, %v750
    %752 = vmatmul.f32.gmra.mxu0 %v731
    %v753 = vpop.f32.mrf.mxu0
    %v754 = vadd.f32 %v715, %v753
    %755 = vdwg.mxu0
    %756 = vmatpush.msra.mxu0 0.0
    %757 = vmatpush.msra.mxu0 0.0
    %758 = vmatpush.msra.mxu0 0.0
    %759 = vmatpush.msra.mxu0 0.0
    %760 = vmatpush.msra.mxu0 0.0
    %761 = vmatpush.msra.mxu0 0.0
    %762 = vmatpush.msra.mxu0 0.0
    %763 = vmatpush.msra.mxu0 0.0
    %764 = vmatpush.msra.mxu0 0.0
    %765 = vmatpush.msra.mxu0 0.0
    %766 = vmatpush.msra.mxu0 0.0
    %767 = vmatpush.msra.mxu0 0.0
    %768 = vmatpush.msra.mxu0 %v708
    %769 = vmatpush.msra.mxu0 %v702
    %770 = vmatpush.msra.mxu0 %v696
    %771 = vmatpush.msra.mxu0 %v690
    %772 = vmatmul.f32.gmra.mxu0 %v728
    %v773 = vpop.f32.mrf.mxu0
    %v774 = vadd.f32 %v716, %v773
    %775 = vmatmul.f32.gmra.mxu0 %v731
    %v776 = vpop.f32.mrf.mxu0
    %v777 = vadd.f32 %v716, %v776
    %778 = vdwg.mxu0
    %779 = vmatpush.msra.mxu0 0.0
    %780 = vmatpush.msra.mxu0 0.0
    %781 = vmatpush.msra.mxu0 0.0
    %782 = vmatpush.msra.mxu0 0.0
    %783 = vmatpush.msra.mxu0 0.0
    %784 = vmatpush.msra.mxu0 0.0
    %785 = vmatpush.msra.mxu0 0.0
    %786 = vmatpush.msra.mxu0 0.0
    %787 = vmatpush.msra.mxu0 0.0
    %788 = vmatpush.msra.mxu0 0.0
    %789 = vmatpush.msra.mxu0 0.0
    %790 = vmatpush.msra.mxu0 0.0
    %791 = vmatpush.msra.mxu0 %v709
    %792 = vmatpush.msra.mxu0 %v703
    %793 = vmatpush.msra.mxu0 %v697
    %794 = vmatpush.msra.mxu0 %v691
    %795 = vmatmul.f32.gmra.mxu0 %v728
    %v796 = vpop.f32.mrf.mxu0
    %v797 = vadd.f32 %v717, %v796
    %798 = vmatmul.f32.gmra.mxu0 %v731
    %v799 = vpop.f32.mrf.mxu0
    %v800 = vadd.f32 %v717, %v799
    %801 = vdwg.mxu0
    %802 = vmatpush.msra.mxu0 0.0
    %803 = vmatpush.msra.mxu0 0.0
    %804 = vmatpush.msra.mxu0 0.0
    %805 = vmatpush.msra.mxu0 0.0
    %806 = vmatpush.msra.mxu0 0.0
    %807 = vmatpush.msra.mxu0 0.0
    %808 = vmatpush.msra.mxu0 0.0
    %809 = vmatpush.msra.mxu0 0.0
    %810 = vmatpush.msra.mxu0 0.0
    %811 = vmatpush.msra.mxu0 0.0
    %812 = vmatpush.msra.mxu0 0.0
    %813 = vmatpush.msra.mxu0 0.0
    %814 = vmatpush.msra.mxu0 %v710
    %815 = vmatpush.msra.mxu0 %v704
    %816 = vmatpush.msra.mxu0 %v698
    %817 = vmatpush.msra.mxu0 %v692
    %818 = vmatmul.f32.gmra.mxu0 %v728
    %v819 = vpop.f32.mrf.mxu0
    %v820 = vadd.f32 %v718, %v819
    %821 = vmatmul.f32.gmra.mxu0 %v731
    %v822 = vpop.f32.mrf.mxu0
    %v823 = vadd.f32 %v718, %v822
    %824 = vdwg.mxu0
    %825 = vmatpush.msra.mxu0 0.0
    %826 = vmatpush.msra.mxu0 0.0
    %827 = vmatpush.msra.mxu0 0.0
    %828 = vmatpush.msra.mxu0 0.0
    %829 = vmatpush.msra.mxu0 0.0
    %830 = vmatpush.msra.mxu0 0.0
    %831 = vmatpush.msra.mxu0 0.0
    %832 = vmatpush.msra.mxu0 0.0
    %833 = vmatpush.msra.mxu0 0.0
    %834 = vmatpush.msra.mxu0 0.0
    %835 = vmatpush.msra.mxu0 0.0
    %836 = vmatpush.msra.mxu0 0.0
    %837 = vmatpush.msra.mxu0 %v711
    %838 = vmatpush.msra.mxu0 %v705
    %839 = vmatpush.msra.mxu0 %v699
    %840 = vmatpush.msra.mxu0 %v693
    %841 = vmatmul.f32.gmra.mxu0 %v728
    %v842 = vpop.f32.mrf.mxu0
    %v843 = vadd.f32 %v719, %v842
    %844 = vmatmul.f32.gmra.mxu0 %v731
    %v845 = vpop.f32.mrf.mxu0
    %v846 = vadd.f32 %v719, %v845
    %847 = vdwg.mxu0
    %848 = vmatpush.msra.mxu0 0.0
    %849 = vmatpush.msra.mxu0 0.0
    %850 = vmatpush.msra.mxu0 0.0
    %851 = vmatpush.msra.mxu0 0.0
    %852 = vmatpush.msra.mxu0 0.0
    %853 = vmatpush.msra.mxu0 0.0
    %854 = vmatpush.msra.mxu0 0.0
    %855 = vmatpush.msra.mxu0 0.0
    %856 = vmatpush.msra.mxu0 0.0
    %857 = vmatpush.msra.mxu0 0.0
    %858 = vmatpush.msra.mxu0 0.0
    %859 = vmatpush.msra.mxu0 0.0
    %860 = vmatpush.msra.mxu0 %v712
    %861 = vmatpush.msra.mxu0 %v706
    %862 = vmatpush.msra.mxu0 %v700
    %863 = vmatpush.msra.mxu0 %v694
    %864 = vmatmul.f32.gmra.mxu0 %v728
    %v865 = vpop.f32.mrf.mxu0
    %v866 = vadd.f32 %v720, %v865
    %867 = vmatmul.f32.gmra.mxu0 %v731
    %v868 = vpop.f32.mrf.mxu0
    %v869 = vadd.f32 %v720, %v868
    %870 = vdwg.mxu0
    %v871 = vsub.f32 %v66, %v751
    %v872 = vsub.f32 %v67, %v774
    %v873 = vsub.f32 %v68, %v797
    %v874 = vsub.f32 %v69, %v820
    %v875 = vsub.f32 %v70, %v843
    %v876 = vsub.f32 %v71, %v866
    %v877 = vsub.f32 %v72, %v754
    %v878 = vsub.f32 %v73, %v777
    %v879 = vsub.f32 %v74, %v800
    %v880 = vsub.f32 %v75, %v823
    %v881 = vsub.f32 %v76, %v846
    %v882 = vsub.f32 %v77, %v869
    %v883 = vmul.f32 %v871, %v871
    %v884 = vmul.f32 %v872, %v872
    %v885 = vmul.f32 %v873, %v873
    %v886 = vmul.f32 %v874, %v874
    %v887 = vmul.f32 %v875, %v875
    %v888 = vmul.f32 %v876, %v876
    %v889 = vmul.f32 %v877, %v877
    %v890 = vmul.f32 %v878, %v878
    %v891 = vmul.f32 %v879, %v879
    %v892 = vmul.f32 %v880, %v880
    %v893 = vmul.f32 %v881, %v881
    %v894 = vmul.f32 %v882, %v882
    %v895 = vadd.f32 %v883, %v884
    %v896 = vadd.f32 %v895, %v885
    %v897 = vadd.f32 %v896, %v886
    %v898 = vadd.f32 %v897, %v887
    %v899 = vadd.f32 %v898, %v888
    %900 = vadd.xlane.f32.xlu0 %v899
    %v901 = vpop.xlane.xlu0 %900
    %v902 = vadd.f32 %v889, %v890
    %v903 = vadd.f32 %v902, %v891
    %v904 = vadd.f32 %v903, %v892
    %v905 = vadd.f32 %v904, %v893
    %v906 = vadd.f32 %v905, %v894
    %907 = vadd.xlane.f32.xlu0 %v906
    %v908 = vpop.xlane.xlu0 %907
    %v909 = vlog2.pop %v392
    %v910 = vmul.f32 %v909, 0.6931472
    %v911 = vlog2.pop %v393
    %v912 = vmul.f32 %v911, 0.6931472
    %v913 = vmul.f32 %v392, %v392
    %v914 = vmul.f32 %v393, %v393
    %v915 = vstv %s65
    %v916 = vsub.f32 %v915, %v910
    %v917 = vsub.f32 %v915, %v912
    %v921 = vrot.slane %v621, 2
    %v922 = vrot.slane %v622, 2
    %v923 = vsel %vm481, %v921, %v922
    %v924 = vrot.slane %v623, 2
    %v925 = vsel %vm481, %v922, %v924
    %v928 = vsub.f32 %v353, %v923
    %v929 = vsub.f32 %v356, %v925
    %v930 = vmul.f32 %v928, %v928
    %v931 = vmul.f32 %v929, %v929
    %934 = vrot.lane.b32.xlu0 %v930, 4
    %v935 = vpop.permute.xlu0 %934
    %936 = vrot.lane.b32.xlu0 %v931, 4
    %v937 = vpop.permute.xlu0 %936
    %v940 = vadd.f32 %v913, %v935
    %v941 = vadd.f32 %v914, %v937
    %v942 = vstv %s64
    %v943 = vmul.f32 %v940, %v942
    %v944 = vmul.f32 %v941, %v942
    %v945 = vadd.f32 %v916, %v943
    %v946 = vadd.f32 %v917, %v944
    %v947 = vsub.f32 %v945, 0.5
    %v948 = vsub.f32 %v946, 0.5
    %951 = vrot.lane.b32.xlu0 %v947, 124
    %v952 = vpop.permute.xlu0 %951
    %953 = vrot.lane.b32.xlu0 %v948, 124
    %v954 = vpop.permute.xlu0 %953
    %v957 = vsel %vm464, %v952, 0.0
    %958 = vadd.xlane.f32.xlu0 %v957
    %v959 = vpop.xlane.xlu0 %958
    %v960 = vsel %vm464, %v954, 0.0
    %961 = vadd.xlane.f32.xlu0 %v960
    %v962 = vpop.xlane.xlu0 %961
    %v963 = vsub.f32 0.0, %v910
    %v964 = vsub.f32 0.0, %v912
    %v965 = vmul.f32 %v353, %v353
    %v966 = vmul.f32 %v356, %v356
    %969 = vrot.lane.b32.xlu0 %v965, 4
    %v970 = vpop.permute.xlu0 %969
    %971 = vrot.lane.b32.xlu0 %v966, 4
    %v972 = vpop.permute.xlu0 %971
    %v975 = vadd.f32 %v913, %v970
    %v976 = vadd.f32 %v914, %v972
    %v977 = vmul.f32 %v975, 0.5
    %v978 = vmul.f32 %v976, 0.5
    %v979 = vadd.f32 %v963, %v977
    %v980 = vadd.f32 %v964, %v978
    %v981 = vsub.f32 %v979, 0.5
    %v982 = vsub.f32 %v980, 0.5
    %985 = vrot.lane.b32.xlu0 %v981, 124
    %v986 = vpop.permute.xlu0 %985
    %987 = vrot.lane.b32.xlu0 %v982, 124
    %v988 = vpop.permute.xlu0 %987
    %v991 = vsel %vm464, %v986, 0.0
    %992 = vadd.xlane.f32.xlu0 %v991
    %v993 = vpop.xlane.xlu0 %992
    %v994 = vsel %vm464, %v988, 0.0
    %995 = vadd.xlane.f32.xlu0 %v994
    %v996 = vpop.xlane.xlu0 %995
    %v1000 = vrot.slane %v615, 2
    %v1001 = vrot.slane %v616, 2
    %v1002 = vsel %vm481, %v1000, %v1001
    %v1003 = vrot.slane %v617, 2
    %v1004 = vsel %vm481, %v1001, %v1003
    %1005 = vrot.lane.b32.xlu0 %v1002, 4
    %v1006 = vpop.permute.xlu0 %1005
    %1007 = vrot.lane.b32.xlu0 %v1004, 4
    %v1008 = vpop.permute.xlu0 %1007
    %v1011 = vsel %vm464, %v412, %v1006
    %v1012 = vsel %vm464, %v413, %v1008
    %v1013 = vsel %vm468, %v1011, %v901
    %v1014 = vsel %vm468, %v1012, %v908
    %vm1015 = vcmask 72704
    %v1016 = vsel %vm1015, %v1013, %v959
    %v1017 = vsel %vm1015, %v1014, %v962
    %vm1018 = vcmask 80896
    %v1019 = vsel %vm1018, %v1016, %v993
    %v1020 = vsel %vm1018, %v1017, %v996
    %vm1021 = vcmask 89088
    %v1022 = vsel %vm1021, %v1019, 0.0
    %v1023 = vsel %vm1021, %v1020, 0.0
    %vm1024 = vcmask 130048
    %1025 = vst.msk [vmem:[#allocation5] sm:$0xff] %vm1024, %v1022
    %1026 = vst.msk [vmem:[#allocation5 + $0x8] sm:$0xff] %vm1024, %v1023
    // Predicated region
    $region62: #{tpu_custom_call.1} parent=1 // pred_check
      _
    $region63: #{tpu_custom_call.1} parent=1 // pred_check_branch
      %1028 = sbr.rel (0) target = $region65
    $region64: #{tpu_custom_call.1} parent=1 // pred_region
      %1030 = vsyncadd [#allocation3], 0
      %s1031 = sshll.u32 [#allocation5], 4
      %s1032 = int_to_ptr.vmem [resolvable:$true] %s1031
      %s1033 = sshll.u32 %s14, 4
      %s1034 = int_to_ptr.hbm [resolvable:$true] %s1033
      %1039 = dma.vmem_to_hbm [thread:$0]  %s1032, 256, %s1034, [#allocation3], 128, 128, 8
    $region65: #{tpu_custom_call.1} parent=1 // pred_fallthru
      _
    // Predicated region
    $region66: #{tpu_custom_call.1} parent=1 // pred_check
      _
    $region67: #{tpu_custom_call.1} parent=1 // pred_check_branch
      %1041 = sbr.rel (0) target = $region69
    $region68: #{tpu_custom_call.1} parent=1 // pred_region
      %1043 = dma.done [#allocation3], 256
    $region69: #{tpu_custom_call.1} parent=1 // pred_fallthru
      _
    %1044 = vsyncpa [#allocation3], 1
    %1045 = vsyncpa [#allocation4], 1

</llo_original>
